<compile_context>
chip_gen: v5e
topology: v5e:2x2
jax: 0.10.0
libtpu: 0.0.40
codegen_flags: <defaults>
</compile_context>

<pallas_src>
from functools import partial

import jax
import jax.numpy as jnp
from jax.experimental import pallas as pl
from jax.experimental.pallas import tpu as pltpu


def _num_embed_kernel(x_ref, w_ref, b_ref, o_ref, *, n_feats, dim):
    # x_ref: [tile_b, N]   w_ref/b_ref: [1, N*D]   o_ref: [tile_b, N*D]
    x = x_ref[...]
    w = w_ref[...]
    b = b_ref[...]
    # Static unrolled loop over the (small) number of numerical feature types:
    # broadcast x[:, i] across the D lanes of its group and fuse mul+add.
    for i in range(n_feats):
        lo, hi = i * dim, (i + 1) * dim
        o_ref[:, lo:hi] = (x[:, i:i + 1] * w[:, lo:hi] + b[:, lo:hi]).astype(o_ref.dtype)


def _round_up(x, m):
    return -(-x // m) * m


def _sublane_rows(dtype):
    # Rows per packed sublane group: 8 for 32-bit, 16 for 16-bit, 32 for 8-bit.
    return max(8, 32 // jnp.dtype(dtype).itemsize)


def _choose_tile_b(B, N, ND, dtype, target_bytes=24 << 20):
    """Row tile from PADDED (layout) VMEM bytes, double-buffered streaming operands."""
    itemsize = jnp.dtype(dtype).itemsize
    sub = _sublane_rows(dtype)
    lanes_out = _round_up(ND, 128)      # output block lane padding
    lanes_x = _round_up(N, 128)         # x block lane padding (N << 128 -> charged here)

    # Resident params (weights/biases, constant index_map) -- small, but charge them.
    param_bytes = 2 * 2 * sub * lanes_out * itemsize
    budget = max(target_bytes - param_bytes, 4 << 20)

    # Per output row: 2 buffers each for the x block and the output block.
    per_row = 2 * (lanes_out + lanes_x) * itemsize
    tile_b = max(sub, (budget // per_row) // sub * sub)

    # v7x megacore: keep >= 2 grid steps when there is enough work to split.
    if B > 2 * sub:
        tile_b = min(tile_b, _round_up(pl.cdiv(B, 2), sub))

    if tile_b >= B:
        return B                        # single full-extent block (tiny inputs)
    return tile_b


def numerical_embedder_forward(x, weights, biases):
    """
    x       : [..., N]
    weights : [N, D]
    biases  : [N, D]
    returns : [B, N, D] with B = prod(x.shape[:-1])
    """
    N, D = weights.shape
    ND = N * D
    x2 = x.reshape(-1, N)
    B = x2.shape[0]

    # TODO(synk): params are cast to x.dtype (halves their DMA bytes for bf16);
    # differs slightly from PyTorch's promoted-dtype math when x is bf16.
    w_flat = weights.astype(x2.dtype).reshape(1, ND)
    b_flat = biases.astype(x2.dtype).reshape(1, ND)

    tile_b = _choose_tile_b(B, N, ND, x2.dtype)
    grid = (pl.cdiv(B, tile_b),)        # ragged last block handled by Pallas

    out_flat = pl.pallas_call(
        partial(_num_embed_kernel, n_feats=N, dim=D),
        out_shape=jax.ShapeDtypeStruct((B, ND), x2.dtype),
        grid_spec=pltpu.PrefetchScalarGridSpec(
            num_scalar_prefetch=0,
            grid=grid,
            in_specs=[
                pl.BlockSpec((tile_b, N), lambda i: (i, 0)),
                pl.BlockSpec((1, ND), lambda i: (0, 0)),     # resident params
                pl.BlockSpec((1, ND), lambda i: (0, 0)),
            ],
            out_specs=pl.BlockSpec((tile_b, ND), lambda i: (i, 0)),
        ),
        compiler_params=pltpu.CompilerParams(
            dimension_semantics=("parallel",),   # v7x: shard row tiles over 2 TCs
            vmem_limit_bytes=48 << 20,
        ),
    )(x2, w_flat, b_flat)

    # Zero-cost view back to the module's [B, N, D] output layout.
    return out_flat.reshape(B, N, D)


if __name__ == "__main__":
    dim = 32                  # D
    num_numerical_types = 4   # N
    batch, extra = 2, 3       # leading dims flattened by the module -> B = 6

    key = jax.random.PRNGKey(0)
    kx, kw, kb = jax.random.split(key, 3)
    x = jax.random.normal(kx, (batch, extra, num_numerical_types), dtype=jnp.float32)
    weights = jax.random.normal(kw, (num_numerical_types, dim), dtype=jnp.float32)
    biases = jax.random.normal(kb, (num_numerical_types, dim), dtype=jnp.float32)

    out = numerical_embedder_forward(x, weights, biases)
    out = jax.block_until_ready(out)

    # Pure-JAX reference: rearrange(x.reshape(-1, N), 'b n -> b n 1') * W + B
    x2 = x.reshape(-1, num_numerical_types)
    ref = x2[:, :, None] * weights[None, :, :] + biases[None, :, :]
    assert out.shape == (batch * extra, num_numerical_types, dim)
    assert jnp.allclose(out, ref, atol=1e-6, rtol=1e-6)

    # Secondary check: batch large enough to exercise >= 2 grid steps and a
    # ragged last block (tile_b is capped at ~ceil(B/2) rounded to sublanes).
    xb = jax.random.normal(jax.random.PRNGKey(1), (1000, num_numerical_types),
                           dtype=jnp.float32)
    outb = jax.block_until_ready(numerical_embedder_forward(xb, weights, biases))
    refb = xb[:, :, None] * weights[None, :, :] + biases[None, :, :]
    assert jnp.allclose(outb, refb, atol=1e-6, rtol=1e-6)

    print("KERNEL_OK")
</pallas_src>

<mosaic_0001>
module attributes {stable_mosaic.version = 11 : i64} {
  func.func @_num_embed_kernel(%arg0: i32, %arg1: memref<6x4xf32, #tpu.memory_space<vmem>>, %arg2: memref<1x128xf32, #tpu.memory_space<vmem>>, %arg3: memref<1x128xf32, #tpu.memory_space<vmem>>, %arg4: memref<6x128xf32, #tpu.memory_space<vmem>>) attributes {dimension_semantics = [#tpu.dimension_semantics<parallel>], iteration_bounds = array<i64: 1>, scalar_prefetch = 0 : i64, scratch_operands = 0 : i64, tpu.core_type = #tpu.core_type<tc>, window_params = [{transform_indices = @transform_0, window_bounds = array<i64: 6, 4>}, {pipeline_mode = #tpu.pipeline_mode<synchronous>, transform_indices = @transform_1, window_bounds = array<i64: 1, 128>}, {pipeline_mode = #tpu.pipeline_mode<synchronous>, transform_indices = @transform_2, window_bounds = array<i64: 1, 128>}, {transform_indices = @transform_3, window_bounds = array<i64: 6, 128>}]} {
    %c0 = arith.constant 0 : index
    %c0_0 = arith.constant 0 : index
    %0 = vector.load %arg1[%c0, %c0_0] : memref<6x4xf32, #tpu.memory_space<vmem>>, vector<6x4xf32>
    %c0_1 = arith.constant 0 : index
    %c0_2 = arith.constant 0 : index
    %1 = vector.load %arg2[%c0_1, %c0_2] : memref<1x128xf32, #tpu.memory_space<vmem>>, vector<1x128xf32>
    %c0_3 = arith.constant 0 : index
    %c0_4 = arith.constant 0 : index
    %2 = vector.load %arg3[%c0_3, %c0_4] : memref<1x128xf32, #tpu.memory_space<vmem>>, vector<1x128xf32>
    %3 = vector.extract_strided_slice %0 {offsets = [0, 0], sizes = [6, 1], strides = [1, 1]} : vector<6x4xf32> to vector<6x1xf32>
    %4 = vector.extract_strided_slice %1 {offsets = [0, 0], sizes = [1, 32], strides = [1, 1]} : vector<1x128xf32> to vector<1x32xf32>
    %5 = vector.broadcast %3 : vector<6x1xf32> to vector<6x32xf32>
    %6 = vector.broadcast %4 : vector<1x32xf32> to vector<6x32xf32>
    %7 = arith.mulf %5, %6 : vector<6x32xf32>
    %8 = vector.extract_strided_slice %2 {offsets = [0, 0], sizes = [1, 32], strides = [1, 1]} : vector<1x128xf32> to vector<1x32xf32>
    %9 = vector.broadcast %8 : vector<1x32xf32> to vector<6x32xf32>
    %10 = arith.addf %7, %9 : vector<6x32xf32>
    %c0_5 = arith.constant 0 : index
    %c0_6 = arith.constant 0 : index
    %11 = vector.load %arg4[%c0_5, %c0_6] : memref<6x128xf32, #tpu.memory_space<vmem>>, vector<6x32xf32>
    tpu.vector_store %arg4[%c0_5, %c0_6], %10 {strides = array<i32>} : memref<6x128xf32, #tpu.memory_space<vmem>>, vector<6x32xf32>,
    %12 = vector.extract_strided_slice %0 {offsets = [0, 1], sizes = [6, 1], strides = [1, 1]} : vector<6x4xf32> to vector<6x1xf32>
    %13 = vector.extract_strided_slice %1 {offsets = [0, 32], sizes = [1, 32], strides = [1, 1]} : vector<1x128xf32> to vector<1x32xf32>
    %14 = vector.broadcast %12 : vector<6x1xf32> to vector<6x32xf32>
    %15 = vector.broadcast %13 : vector<1x32xf32> to vector<6x32xf32>
    %16 = arith.mulf %14, %15 : vector<6x32xf32>
    %17 = vector.extract_strided_slice %2 {offsets = [0, 32], sizes = [1, 32], strides = [1, 1]} : vector<1x128xf32> to vector<1x32xf32>
    %18 = vector.broadcast %17 : vector<1x32xf32> to vector<6x32xf32>
    %19 = arith.addf %16, %18 : vector<6x32xf32>
    %c0_7 = arith.constant 0 : index
    %c32 = arith.constant 32 : index
    %20 = vector.load %arg4[%c0_7, %c32] : memref<6x128xf32, #tpu.memory_space<vmem>>, vector<6x32xf32>
    tpu.vector_store %arg4[%c0_7, %c32], %19 {strides = array<i32>} : memref<6x128xf32, #tpu.memory_space<vmem>>, vector<6x32xf32>,
    %21 = vector.extract_strided_slice %0 {offsets = [0, 2], sizes = [6, 1], strides = [1, 1]} : vector<6x4xf32> to vector<6x1xf32>
    %22 = vector.extract_strided_slice %1 {offsets = [0, 64], sizes = [1, 32], strides = [1, 1]} : vector<1x128xf32> to vector<1x32xf32>
    %23 = vector.broadcast %21 : vector<6x1xf32> to vector<6x32xf32>
    %24 = vector.broadcast %22 : vector<1x32xf32> to vector<6x32xf32>
    %25 = arith.mulf %23, %24 : vector<6x32xf32>
    %26 = vector.extract_strided_slice %2 {offsets = [0, 64], sizes = [1, 32], strides = [1, 1]} : vector<1x128xf32> to vector<1x32xf32>
    %27 = vector.broadcast %26 : vector<1x32xf32> to vector<6x32xf32>
    %28 = arith.addf %25, %27 : vector<6x32xf32>
    %c0_8 = arith.constant 0 : index
    %c64 = arith.constant 64 : index
    %29 = vector.load %arg4[%c0_8, %c64] : memref<6x128xf32, #tpu.memory_space<vmem>>, vector<6x32xf32>
    tpu.vector_store %arg4[%c0_8, %c64], %28 {strides = array<i32>} : memref<6x128xf32, #tpu.memory_space<vmem>>, vector<6x32xf32>,
    %30 = vector.extract_strided_slice %0 {offsets = [0, 3], sizes = [6, 1], strides = [1, 1]} : vector<6x4xf32> to vector<6x1xf32>
    %31 = vector.extract_strided_slice %1 {offsets = [0, 96], sizes = [1, 32], strides = [1, 1]} : vector<1x128xf32> to vector<1x32xf32>
    %32 = vector.broadcast %30 : vector<6x1xf32> to vector<6x32xf32>
    %33 = vector.broadcast %31 : vector<1x32xf32> to vector<6x32xf32>
    %34 = arith.mulf %32, %33 : vector<6x32xf32>
    %35 = vector.extract_strided_slice %2 {offsets = [0, 96], sizes = [1, 32], strides = [1, 1]} : vector<1x128xf32> to vector<1x32xf32>
    %36 = vector.broadcast %35 : vector<1x32xf32> to vector<6x32xf32>
    %37 = arith.addf %34, %36 : vector<6x32xf32>
    %c0_9 = arith.constant 0 : index
    %c96 = arith.constant 96 : index
    %38 = vector.load %arg4[%c0_9, %c96] : memref<6x128xf32, #tpu.memory_space<vmem>>, vector<6x32xf32>
    tpu.vector_store %arg4[%c0_9, %c96], %37 {strides = array<i32>} : memref<6x128xf32, #tpu.memory_space<vmem>>, vector<6x32xf32>,
    return
  }
  func.func @transform_0(%arg0: i32) -> (i32, i32) {
    %c0_i32 = arith.constant 0 : i32
    %c0_i32_0 = arith.constant 0 : i32
    return %arg0, %c0_i32 : i32, i32
  }
  func.func @transform_1(%arg0: i32) -> (i32, i32) {
    %c0_i32 = arith.constant 0 : i32
    %c0_i32_0 = arith.constant 0 : i32
    %c0_i32_1 = arith.constant 0 : i32
    return %c0_i32, %c0_i32_0 : i32, i32
  }
  func.func @transform_2(%arg0: i32) -> (i32, i32) {
    %c0_i32 = arith.constant 0 : i32
    %c0_i32_0 = arith.constant 0 : i32
    %c0_i32_1 = arith.constant 0 : i32
    return %c0_i32, %c0_i32_0 : i32, i32
  }
  func.func @transform_3(%arg0: i32) -> (i32, i32) {
    %c0_i32 = arith.constant 0 : i32
    %c0_i32_0 = arith.constant 0 : i32
    return %arg0, %c0_i32 : i32, i32
  }
}

</mosaic_0001>

<llo_original>
// kernel: tpu_custom_call.1
$region0: #{tpu_custom_call.1}
  #allocation0 [shape = 'u32[]', space=smem, size = 0x4, offset = 0x4, fixed_abs, tag = 'smem constant byte address 0x4 - core index']
  #allocation1 [shape = 'u32[72,128]{1,0:T(1,128)}', space=vmem, size = 0x9000, scoped, tag = 'internal scratch']
  %s0 = inlined_call_operand.vmem [shape: f32[6,4], index: 0, kind: input, shape index: {}]
  %s1 = inlined_call_operand.vmem [shape: f32[1,128], index: 1, kind: input, shape index: {}]
  %s2 = inlined_call_operand.vmem [shape: f32[1,128], index: 2, kind: input, shape index: {}]
  %s3 = inlined_call_operand.hbm [shape: f32[6,128], index: 3, kind: output, shape index: {}]
  %s4 = sld [smem:[#allocation0]]
  $region22: #{tpu_custom_call.1} parent=0
    _
  %s6 = ssub.s32 1, %s4
  %s7 = scalar_select 0, %s6, %s4
  $region1: #{tpu_custom_call.1} parent=0
    #allocation2 [shape = 'u8[4096]{0}', space=vmem, size = 0x1000, scoped, tag = 'output window, operand 0, single buffered']
    #allocation3 [shape = 's32[1]{0}', space=sflag, size = 0x4, scoped, tag = 'scoped memory for tpu_custom_call.1']
    %8 = vsyncpa [#allocation3], 0
    // Predicated region
    $region2: #{tpu_custom_call.1} parent=1 // pred_check
      _
    $region3: #{tpu_custom_call.1} parent=1 // pred_check_branch
      %10 = sbr.rel (0) target = $region5
    $region4: #{tpu_custom_call.1} parent=1 // pred_region
      _
    $region5: #{tpu_custom_call.1} parent=1 // pred_fallthru
      _
    // Predicated region
    $region6: #{tpu_custom_call.1} parent=1 // pred_check
      _
    $region7: #{tpu_custom_call.1} parent=1 // pred_check_branch
      %12 = sbr.rel (0) target = $region9
    $region8: #{tpu_custom_call.1} parent=1 // pred_region
      _
    $region9: #{tpu_custom_call.1} parent=1 // pred_fallthru
      _
    // Predicated region
    $region10: #{tpu_custom_call.1} parent=1 // pred_check
      _
    $region11: #{tpu_custom_call.1} parent=1 // pred_check_branch
      %14 = sbr.rel (0) target = $region13
    $region12: #{tpu_custom_call.1} parent=1 // pred_region
      _
    $region13: #{tpu_custom_call.1} parent=1 // pred_fallthru
      _
    %v15 = vld [vmem:[%s0] sm:$0x3f]
    %v16 = vld [vmem:[%s1] sm:$0x1]
    %v17 = vld [vmem:[%s2] sm:$0x1]
    %19 = vset.pattern.permute.xlu0 0
    %20 = vperm.xlu0 %19, %v15
    %v21 = vpop.permute.xlu0 %20
    %v24 = vperm.slane %v16, 0
    %v26 = vmul.f32 %v21, %v24
    %v28 = vperm.slane %v17, 0
    %v30 = vadd.f32 %v26, %v28
    %vm31 = vcmask 259072
    %32 = vst.msk [vmem:[#allocation2] sm:$0x3f] %vm31, %v30
    %33 = vset.pattern.permute.xlu0 1
    %34 = vperm.xlu0 %33, %v15
    %v35 = vpop.permute.xlu0 %34
    %v37 = vmul.f32 %v35, %v24
    %v38 = vadd.f32 %v37, %v28
    %vm39 = vcmask 521472
    %40 = vst.msk [vmem:[#allocation2] sm:$0x3f] %vm39, %v38
    %41 = vset.pattern.permute.xlu0 2
    %42 = vperm.xlu0 %41, %v15
    %v43 = vpop.permute.xlu0 %42
    %v45 = vmul.f32 %v43, %v24
    %v46 = vadd.f32 %v45, %v28
    %vm47 = vcmask 783872
    %48 = vst.msk [vmem:[#allocation2] sm:$0x3f] %vm47, %v46
    %49 = vset.pattern.permute.xlu0 3
    %50 = vperm.xlu0 %49, %v15
    %v51 = vpop.permute.xlu0 %50
    %v53 = vmul.f32 %v51, %v24
    %v54 = vadd.f32 %v53, %v28
    %vm55 = vcmask 1046272
    %56 = vst.msk [vmem:[#allocation2] sm:$0x3f] %vm55, %v54
    // Predicated region
    $region14: #{tpu_custom_call.1} parent=1 // pred_check
      _
    $region15: #{tpu_custom_call.1} parent=1 // pred_check_branch
      %58 = sbr.rel (0) target = $region17
    $region16: #{tpu_custom_call.1} parent=1 // pred_region
      %60 = vsyncadd [#allocation3], 0
      %s62 = sshll.u32 [#allocation2], 4
      %s63 = int_to_ptr.vmem [resolvable:$true] %s62
      %s64 = sshll.u32 %s3, 4
      %s65 = int_to_ptr.hbm [resolvable:$true] %s64
      %67 = dma.vmem_to_hbm [thread:$0]  %s63, 128, %s65, [#allocation3]
    $region17: #{tpu_custom_call.1} parent=1 // pred_fallthru
      _
    // Predicated region
    $region18: #{tpu_custom_call.1} parent=1 // pred_check
      _
    $region19: #{tpu_custom_call.1} parent=1 // pred_check_branch
      %69 = sbr.rel (0) target = $region21
    $region20: #{tpu_custom_call.1} parent=1 // pred_region
      %71 = dma.done [#allocation3], 128
    $region21: #{tpu_custom_call.1} parent=1 // pred_fallthru
      _
    %72 = vsyncpa [#allocation3], 1

</llo_original>
